<compile_context>
chip_gen: v5e
topology: v5e:2x2
jax: 0.10.0
libtpu: 0.0.40
codegen_flags: <defaults>
</compile_context>

<pallas_src>
import functools

import jax
import jax.numpy as jnp
from jax.experimental import pallas as pl
from jax.experimental.pallas import tpu as pltpu


def _round_up(x, m):
    return ((x + m - 1) // m) * m


def _mpnn_kernel(x_ref, a_ref, w_ref, b_ref, o_ref, *, n_hops, bt, neg_slope):
    """One grid step processes `bt` batch elements.

    x_ref: (bt, Np, Dip)       VMEM
    a_ref: (bt, Np, Np)        VMEM
    w_ref: (n_hops, Dip, Dop)  VMEM (replicated; pre-transposed, kk=0/1 folded)
    b_ref: (1, Dop)            VMEM (replicated; pre-summed biases, f32)
    o_ref: (bt, Np, Dop)       VMEM
    """
    bias = b_ref[...]                                                     # (1, Dop) f32
    for i in range(bt):                                                   # static, unrolled
        A = a_ref[i]                                                      # (Np, Np)
        # Hop 1: A @ X  (feeds both the original kk=0 and kk=1 linears via folded W)
        ax = jnp.dot(A, x_ref[i], preferred_element_type=jnp.float32)     # (Np, Dip) f32
        acc = jnp.dot(ax, w_ref[0], preferred_element_type=jnp.float32)   # (Np, Dop) f32
        # Hops p = 2 .. n_hops: propagate AX instead of materialising A^p (O(N^2*D)).
        for p in range(1, n_hops):
            ax = jnp.dot(A, ax, preferred_element_type=jnp.float32)
            acc = acc + jnp.dot(ax, w_ref[p], preferred_element_type=jnp.float32)
        acc = acc + bias
        # F.leaky_relu with PyTorch default negative_slope = 0.01
        o_ref[i] = jnp.where(acc > 0, acc, neg_slope * acc).astype(o_ref.dtype)


def mpnn_mk_pallas(X, A, weights, biases, *, k, negative_slope=0.01):
    """X: (B, N, Din), A: (B, N, N), weights: (k, Dout, Din), biases: (k, Dout)."""
    assert k >= 1
    B, N, Din = X.shape
    Dout = weights.shape[1]

    # ---- host-side parameter folding -------------------------------------------------
    # kk=0 and kk=1 both consume A^1 @ X -> sum their weights; the multi-field combine is
    # a plain sum -> all biases can be pre-summed and added once.
    n_hops = max(1, k - 1)
    w_f32 = weights.astype(jnp.float32)
    if k >= 2:
        w_eff = jnp.concatenate([(w_f32[0] + w_f32[1])[None], w_f32[2:]], axis=0)
    else:
        w_eff = w_f32                                                   # (n_hops, Dout, Din)
    w_eff = jnp.transpose(w_eff, (0, 2, 1)).astype(weights.dtype)       # (n_hops, Din, Dout)
    b_sum = jnp.sum(biases.astype(jnp.float32), axis=0)[None, :]        # (1, Dout) f32

    # ---- padding to TPU-friendly shapes ----------------------------------------------
    Np = _round_up(N, 8)                     # sublane alignment for X / A / out
    Dip = _round_up(Din, 128)                # lane-dense X / weight rows
    Dop = _round_up(Dout, 128)               # lane-dense output stores (biggest lever)

    Xp = jnp.pad(X, ((0, 0), (0, Np - N), (0, Dip - Din)))
    Ap = jnp.pad(A, ((0, 0), (0, Np - N), (0, Np - N)))
    Wp = jnp.pad(w_eff, ((0, 0), (0, Dip - Din), (0, Dop - Dout)))
    bp = jnp.pad(b_sum, ((0, 0), (0, Dop - Dout)))

    x_item = jnp.dtype(Xp.dtype).itemsize
    a_item = jnp.dtype(Ap.dtype).itemsize
    w_item = jnp.dtype(Wp.dtype).itemsize

    # ---- pick how many batch elements to block per grid step -------------------------
    per_batch = Np * Np * a_item + Np * Dip * x_item + Np * Dop * x_item
    budget = 6 << 20                          # keep double-buffered blocks well inside VMEM
    bt = 1
    for cand in range(1, B + 1):
        if B % cand == 0 and cand * per_batch <= budget:
            bt = cand

    weight_bytes = n_hops * Dip * Dop * w_item
    vmem_need = 2 * bt * per_batch + weight_bytes + Dop * 4 + (1 << 20)
    vmem_limit = min(int(vmem_need * 1.2), 64 << 20) if vmem_need > (30 << 20) else None

    cost = pl.CostEstimate(
        flops=int(2 * B * n_hops * (Np * Np * Dip + Np * Dip * Dop)),
        transcendentals=0,
        bytes_accessed=int(B * (Np * Np * a_item + Np * Dip * x_item + Np * Dop * x_item)
                           + weight_bytes + Dop * 4),
    )

    kernel = functools.partial(_mpnn_kernel, n_hops=n_hops, bt=bt,
                               neg_slope=negative_slope)

    out_padded = pl.pallas_call(
        kernel,
        out_shape=jax.ShapeDtypeStruct((B, Np, Dop), X.dtype),
        grid_spec=pltpu.PrefetchScalarGridSpec(
            num_scalar_prefetch=0,
            grid=(B // bt,),
            in_specs=[
                pl.BlockSpec((bt, Np, Dip), lambda g: (g, 0, 0)),
                pl.BlockSpec((bt, Np, Np), lambda g: (g, 0, 0)),
                pl.BlockSpec((n_hops, Dip, Dop), lambda g: (0, 0, 0)),
                pl.BlockSpec((1, Dop), lambda g: (0, 0)),
            ],
            out_specs=pl.BlockSpec((bt, Np, Dop), lambda g: (g, 0, 0)),
        ),
        compiler_params=pltpu.CompilerParams(
            dimension_semantics=("parallel",),
            vmem_limit_bytes=vmem_limit,
        ),
        cost_estimate=cost,
    )(Xp, Ap, Wp, bp)

    return out_padded[:, :N, :Dout]


def mpnn_mk_reference(X, A, weights, biases, *, k):
    """Pure-JAX reference mirroring the PyTorch forward exactly (A-power chain)."""
    A_ = A
    acc = None
    for kk in range(k):
        AX = jnp.einsum("bnm,bmd->bnd", A_, X)
        out_k = jnp.einsum("bnd,od->bno", AX, weights[kk]) + biases[kk]
        acc = out_k if acc is None else acc + out_k
        if kk > 0:
            A_ = jnp.einsum("bnm,bmp->bnp", A_, A)
    return jnp.where(acc > 0, acc, 0.01 * acc)


if __name__ == "__main__":
    # Small, deterministic example shapes.
    B, N, Din, Dout, K = 2, 16, 32, 32, 3

    key = jax.random.PRNGKey(0)
    kx, ka, kw, kb = jax.random.split(key, 4)

    X = jax.random.normal(kx, (B, N, Din), dtype=jnp.float32)
    A = jax.random.normal(ka, (B, N, N), dtype=jnp.float32) * 0.1  # keep A^k powers tame

    # Deterministic parameter init (nn.Linear-style uniform bound).
    bound = 1.0 / (Din ** 0.5)
    weights = jax.random.uniform(kw, (K, Dout, Din), minval=-bound, maxval=bound,
                                 dtype=jnp.float32)
    biases = jax.random.uniform(kb, (K, Dout), minval=-bound, maxval=bound,
                                dtype=jnp.float32)

    out = mpnn_mk_pallas(X, A, weights, biases, k=K)
    out = jax.block_until_ready(out)

    ref = mpnn_mk_reference(X, A, weights, biases, k=K)
    assert out.shape == (B, N, Dout)
    assert jnp.allclose(out, ref, atol=1e-4, rtol=1e-4), "mismatch vs reference"

    print("KERNEL_OK")
</pallas_src>

<mosaic_0001>
module attributes {stable_mosaic.version = 11 : i64} {
  func.func @_mpnn_kernel(%arg0: i32, %arg1: memref<2x16x128xf32, #tpu.memory_space<vmem>>, %arg2: memref<2x16x16xf32, #tpu.memory_space<vmem>>, %arg3: memref<2x128x128xf32, #tpu.memory_space<vmem>>, %arg4: memref<1x128xf32, #tpu.memory_space<vmem>>, %arg5: memref<2x16x128xf32, #tpu.memory_space<vmem>>) attributes {dimension_semantics = [#tpu.dimension_semantics<parallel>], iteration_bounds = array<i64: 1>, scalar_prefetch = 0 : i64, scratch_operands = 0 : i64, tpu.core_type = #tpu.core_type<tc>, window_params = [{transform_indices = @transform_0, window_bounds = array<i64: 2, 16, 128>}, {transform_indices = @transform_1, window_bounds = array<i64: 2, 16, 16>}, {pipeline_mode = #tpu.pipeline_mode<synchronous>, transform_indices = @transform_2, window_bounds = array<i64: 2, 128, 128>}, {pipeline_mode = #tpu.pipeline_mode<synchronous>, transform_indices = @transform_3, window_bounds = array<i64: 1, 128>}, {transform_indices = @transform_4, window_bounds = array<i64: 2, 16, 128>}]} {
    %c0 = arith.constant 0 : index
    %c0_0 = arith.constant 0 : index
    %0 = vector.load %arg4[%c0, %c0_0] : memref<1x128xf32, #tpu.memory_space<vmem>>, vector<1x128xf32>
    %c0_1 = arith.constant 0 : index
    %c0_2 = arith.constant 0 : index
    %c0_3 = arith.constant 0 : index
    %1 = vector.load %arg2[%c0_1, %c0_2, %c0_3] : memref<2x16x16xf32, #tpu.memory_space<vmem>>, vector<1x16x16xf32>
    %2 = vector.shape_cast %1 : vector<1x16x16xf32> to vector<16x16xf32>
    %c0_4 = arith.constant 0 : index
    %c0_5 = arith.constant 0 : index
    %c0_6 = arith.constant 0 : index
    %3 = vector.load %arg1[%c0_4, %c0_5, %c0_6] : memref<2x16x128xf32, #tpu.memory_space<vmem>>, vector<1x16x128xf32>
    %4 = vector.shape_cast %3 : vector<1x16x128xf32> to vector<16x128xf32>
    %cst = arith.constant dense<0.000000e+00> : vector<16x128xf32>
    %5 = tpu.matmul %2, %4, %cst {dimension_numbers = #tpu.dot_dimension_numbers<[1], [0], [0], [1], [0, 0, 1, 1], [], []>} : vector<16x16xf32>, vector<16x128xf32>, vector<16x128xf32> -> vector<16x128xf32>
    %c0_7 = arith.constant 0 : index
    %c0_8 = arith.constant 0 : index
    %c0_9 = arith.constant 0 : index
    %6 = vector.load %arg3[%c0_7, %c0_8, %c0_9] : memref<2x128x128xf32, #tpu.memory_space<vmem>>, vector<1x128x128xf32>
    %7 = vector.shape_cast %6 : vector<1x128x128xf32> to vector<128x128xf32>
    %cst_10 = arith.constant dense<0.000000e+00> : vector<16x128xf32>
    %8 = tpu.matmul %5, %7, %cst_10 {dimension_numbers = #tpu.dot_dimension_numbers<[1], [0], [0], [1], [0, 0, 1, 1], [], []>} : vector<16x128xf32>, vector<128x128xf32>, vector<16x128xf32> -> vector<16x128xf32>
    %cst_11 = arith.constant dense<0.000000e+00> : vector<16x128xf32>
    %9 = tpu.matmul %2, %5, %cst_11 {dimension_numbers = #tpu.dot_dimension_numbers<[1], [0], [0], [1], [0, 0, 1, 1], [], []>} : vector<16x16xf32>, vector<16x128xf32>, vector<16x128xf32> -> vector<16x128xf32>
    %c1 = arith.constant 1 : index
    %c0_12 = arith.constant 0 : index
    %c0_13 = arith.constant 0 : index
    %10 = vector.load %arg3[%c1, %c0_12, %c0_13] : memref<2x128x128xf32, #tpu.memory_space<vmem>>, vector<1x128x128xf32>
    %11 = vector.shape_cast %10 : vector<1x128x128xf32> to vector<128x128xf32>
    %cst_14 = arith.constant dense<0.000000e+00> : vector<16x128xf32>
    %12 = tpu.matmul %9, %11, %cst_14 {dimension_numbers = #tpu.dot_dimension_numbers<[1], [0], [0], [1], [0, 0, 1, 1], [], []>} : vector<16x128xf32>, vector<128x128xf32>, vector<16x128xf32> -> vector<16x128xf32>
    %13 = arith.addf %8, %12 : vector<16x128xf32>
    %14 = vector.broadcast %0 : vector<1x128xf32> to vector<16x128xf32>
    %15 = arith.addf %13, %14 : vector<16x128xf32>
    %cst_15 = arith.constant 0.000000e+00 : f32
    %16 = vector.broadcast %cst_15 : f32 to vector<16x128xf32>
    %17 = arith.cmpf ogt, %15, %16 : vector<16x128xf32>
    %cst_16 = arith.constant 0.00999999977 : f32
    %18 = vector.broadcast %cst_16 : f32 to vector<16x128xf32>
    %19 = arith.mulf %18, %15 : vector<16x128xf32>
    %20 = arith.select %17, %15, %19 : vector<16x128xi1>, vector<16x128xf32>
    %c0_17 = arith.constant 0 : index
    %c0_18 = arith.constant 0 : index
    %c0_19 = arith.constant 0 : index
    %21 = vector.load %arg5[%c0_17, %c0_18, %c0_19] : memref<2x16x128xf32, #tpu.memory_space<vmem>>, vector<1x16x128xf32>
    %22 = vector.shape_cast %21 : vector<1x16x128xf32> to vector<16x128xf32>
    %23 = vector.shape_cast %20 : vector<16x128xf32> to vector<1x16x128xf32>
    tpu.vector_store %arg5[%c0_17, %c0_18, %c0_19], %23 {strides = array<i32>} : memref<2x16x128xf32, #tpu.memory_space<vmem>>, vector<1x16x128xf32>,
    %c1_20 = arith.constant 1 : index
    %c0_21 = arith.constant 0 : index
    %c0_22 = arith.constant 0 : index
    %24 = vector.load %arg2[%c1_20, %c0_21, %c0_22] : memref<2x16x16xf32, #tpu.memory_space<vmem>>, vector<1x16x16xf32>
    %25 = vector.shape_cast %24 : vector<1x16x16xf32> to vector<16x16xf32>
    %c1_23 = arith.constant 1 : index
    %c0_24 = arith.constant 0 : index
    %c0_25 = arith.constant 0 : index
    %26 = vector.load %arg1[%c1_23, %c0_24, %c0_25] : memref<2x16x128xf32, #tpu.memory_space<vmem>>, vector<1x16x128xf32>
    %27 = vector.shape_cast %26 : vector<1x16x128xf32> to vector<16x128xf32>
    %cst_26 = arith.constant dense<0.000000e+00> : vector<16x128xf32>
    %28 = tpu.matmul %25, %27, %cst_26 {dimension_numbers = #tpu.dot_dimension_numbers<[1], [0], [0], [1], [0, 0, 1, 1], [], []>} : vector<16x16xf32>, vector<16x128xf32>, vector<16x128xf32> -> vector<16x128xf32>
    %c0_27 = arith.constant 0 : index
    %c0_28 = arith.constant 0 : index
    %c0_29 = arith.constant 0 : index
    %29 = vector.load %arg3[%c0_27, %c0_28, %c0_29] : memref<2x128x128xf32, #tpu.memory_space<vmem>>, vector<1x128x128xf32>
    %30 = vector.shape_cast %29 : vector<1x128x128xf32> to vector<128x128xf32>
    %cst_30 = arith.constant dense<0.000000e+00> : vector<16x128xf32>
    %31 = tpu.matmul %28, %30, %cst_30 {dimension_numbers = #tpu.dot_dimension_numbers<[1], [0], [0], [1], [0, 0, 1, 1], [], []>} : vector<16x128xf32>, vector<128x128xf32>, vector<16x128xf32> -> vector<16x128xf32>
    %cst_31 = arith.constant dense<0.000000e+00> : vector<16x128xf32>
    %32 = tpu.matmul %25, %28, %cst_31 {dimension_numbers = #tpu.dot_dimension_numbers<[1], [0], [0], [1], [0, 0, 1, 1], [], []>} : vector<16x16xf32>, vector<16x128xf32>, vector<16x128xf32> -> vector<16x128xf32>
    %c1_32 = arith.constant 1 : index
    %c0_33 = arith.constant 0 : index
    %c0_34 = arith.constant 0 : index
    %33 = vector.load %arg3[%c1_32, %c0_33, %c0_34] : memref<2x128x128xf32, #tpu.memory_space<vmem>>, vector<1x128x128xf32>
    %34 = vector.shape_cast %33 : vector<1x128x128xf32> to vector<128x128xf32>
    %cst_35 = arith.constant dense<0.000000e+00> : vector<16x128xf32>
    %35 = tpu.matmul %32, %34, %cst_35 {dimension_numbers = #tpu.dot_dimension_numbers<[1], [0], [0], [1], [0, 0, 1, 1], [], []>} : vector<16x128xf32>, vector<128x128xf32>, vector<16x128xf32> -> vector<16x128xf32>
    %36 = arith.addf %31, %35 : vector<16x128xf32>
    %37 = vector.broadcast %0 : vector<1x128xf32> to vector<16x128xf32>
    %38 = arith.addf %36, %37 : vector<16x128xf32>
    %cst_36 = arith.constant 0.000000e+00 : f32
    %39 = vector.broadcast %cst_36 : f32 to vector<16x128xf32>
    %40 = arith.cmpf ogt, %38, %39 : vector<16x128xf32>
    %cst_37 = arith.constant 0.00999999977 : f32
    %41 = vector.broadcast %cst_37 : f32 to vector<16x128xf32>
    %42 = arith.mulf %41, %38 : vector<16x128xf32>
    %43 = arith.select %40, %38, %42 : vector<16x128xi1>, vector<16x128xf32>
    %c1_38 = arith.constant 1 : index
    %c0_39 = arith.constant 0 : index
    %c0_40 = arith.constant 0 : index
    %44 = vector.load %arg5[%c1_38, %c0_39, %c0_40] : memref<2x16x128xf32, #tpu.memory_space<vmem>>, vector<1x16x128xf32>
    %45 = vector.shape_cast %44 : vector<1x16x128xf32> to vector<16x128xf32>
    %46 = vector.shape_cast %43 : vector<16x128xf32> to vector<1x16x128xf32>
    tpu.vector_store %arg5[%c1_38, %c0_39, %c0_40], %46 {strides = array<i32>} : memref<2x16x128xf32, #tpu.memory_space<vmem>>, vector<1x16x128xf32>,
    return
  }
  func.func @transform_0(%arg0: i32) -> (i32, i32, i32) {
    %c0_i32 = arith.constant 0 : i32
    %c0_i32_0 = arith.constant 0 : i32
    %c0_i32_1 = arith.constant 0 : i32
    return %arg0, %c0_i32, %c0_i32_0 : i32, i32, i32
  }
  func.func @transform_1(%arg0: i32) -> (i32, i32, i32) {
    %c0_i32 = arith.constant 0 : i32
    %c0_i32_0 = arith.constant 0 : i32
    %c0_i32_1 = arith.constant 0 : i32
    return %arg0, %c0_i32, %c0_i32_0 : i32, i32, i32
  }
  func.func @transform_2(%arg0: i32) -> (i32, i32, i32) {
    %c0_i32 = arith.constant 0 : i32
    %c0_i32_0 = arith.constant 0 : i32
    %c0_i32_1 = arith.constant 0 : i32
    %c0_i32_2 = arith.constant 0 : i32
    return %c0_i32, %c0_i32_0, %c0_i32_1 : i32, i32, i32
  }
  func.func @transform_3(%arg0: i32) -> (i32, i32) {
    %c0_i32 = arith.constant 0 : i32
    %c0_i32_0 = arith.constant 0 : i32
    %c0_i32_1 = arith.constant 0 : i32
    return %c0_i32, %c0_i32_0 : i32, i32
  }
  func.func @transform_4(%arg0: i32) -> (i32, i32, i32) {
    %c0_i32 = arith.constant 0 : i32
    %c0_i32_0 = arith.constant 0 : i32
    %c0_i32_1 = arith.constant 0 : i32
    return %arg0, %c0_i32, %c0_i32_0 : i32, i32, i32
  }
}

</mosaic_0001>

<llo_original>
// kernel: tpu_custom_call.1
$region0: #{tpu_custom_call.1}
  #allocation0 [shape = 'u32[]', space=smem, size = 0x4, offset = 0x4, fixed_abs, tag = 'smem constant byte address 0x4 - core index']
  #allocation1 [shape = 'u32[72,128]{1,0:T(1,128)}', space=vmem, size = 0x9000, scoped, tag = 'internal scratch']
  %s0 = inlined_call_operand.hbm [shape: f32[2,16,128], index: 0, kind: input, shape index: {}]
  %s1 = inlined_call_operand.hbm [shape: f32[2,16,16], index: 1, kind: input, shape index: {}]
  %s2 = inlined_call_operand.hbm [shape: f32[2,128,128], index: 2, kind: input, shape index: {}]
  %s3 = inlined_call_operand.vmem [shape: f32[1,128], index: 3, kind: input, shape index: {}]
  %s4 = inlined_call_operand.hbm [shape: f32[2,16,128], index: 4, kind: output, shape index: {}]
  %s5 = sld [smem:[#allocation0]]
  $region38: #{tpu_custom_call.1} parent=0
    _
  %s7 = ssub.s32 1, %s5
  %s8 = scalar_select 0, %s7, %s5
  $region1: #{tpu_custom_call.1} parent=0
    #allocation2 [shape = 'u8[16384]{0}', space=vmem, size = 0x4000, scoped, tag = 'input window, operand 0, single buffered']
    #allocation3 [shape = 's32[1]{0}', space=sflag, size = 0x4, scoped, tag = 'scoped memory for tpu_custom_call.1']
    #allocation4 [shape = 's32[1]{0}', space=sflag, size = 0x4, scoped, tag = 'scoped memory for tpu_custom_call.1']
    #allocation5 [shape = 'u8[16384]{0}', space=vmem, size = 0x4000, scoped, tag = 'input window, operand 1, single buffered']
    #allocation6 [shape = 's32[1]{0}', space=sflag, size = 0x4, scoped, tag = 'scoped memory for tpu_custom_call.1']
    #allocation7 [shape = 'u8[131072]{0}', space=vmem, size = 0x20000, scoped, tag = 'input window, operand 2, single buffered']
    #allocation8 [shape = 'u8[16384]{0}', space=vmem, size = 0x4000, scoped, tag = 'output window, operand 0, single buffered']
    %9 = vsyncpa [#allocation3], 0
    %10 = vsyncpa [#allocation6], 0
    %11 = vsyncpa [#allocation4], 0
    // Predicated region
    $region2: #{tpu_custom_call.1} parent=1 // pred_check
      _
    $region3: #{tpu_custom_call.1} parent=1 // pred_check_branch
      %13 = sbr.rel (0) target = $region5
    $region4: #{tpu_custom_call.1} parent=1 // pred_region
      %15 = vsyncadd [#allocation3], 0
      %s16 = sshll.u32 %s0, 4
      %s17 = int_to_ptr.hbm [resolvable:$true] %s16
      %s18 = sshll.u32 [#allocation2], 4
      %s19 = int_to_ptr.vmem [resolvable:$true] %s18
      %24 = dma.hbm_to_vmem [thread:$0]  %s17, 512, %s19, [#allocation3], 128, 128, 8
    $region5: #{tpu_custom_call.1} parent=1 // pred_fallthru
      _
    // Predicated region
    $region6: #{tpu_custom_call.1} parent=1 // pred_check
      _
    $region7: #{tpu_custom_call.1} parent=1 // pred_check_branch
      %26 = sbr.rel (0) target = $region9
    $region8: #{tpu_custom_call.1} parent=1 // pred_region
      %28 = vsyncadd [#allocation6], 0
      %s29 = sshll.u32 %s1, 4
      %s30 = int_to_ptr.hbm [resolvable:$true] %s29
      %s31 = sshll.u32 [#allocation5], 4
      %s32 = int_to_ptr.vmem [resolvable:$true] %s31
      %37 = dma.hbm_to_vmem [thread:$0]  %s30, 512, %s32, [#allocation6], 128, 128, 8
    $region9: #{tpu_custom_call.1} parent=1 // pred_fallthru
      _
    // Predicated region
    $region10: #{tpu_custom_call.1} parent=1 // pred_check
      _
    $region11: #{tpu_custom_call.1} parent=1 // pred_check_branch
      %39 = sbr.rel (0) target = $region13
    $region12: #{tpu_custom_call.1} parent=1 // pred_region
      %41 = vsyncadd [#allocation6], 0
      %s42 = sshll.u32 %s2, 4
      %s43 = int_to_ptr.hbm [resolvable:$true] %s42
      %s44 = sshll.u32 [#allocation7], 4
      %s45 = int_to_ptr.vmem [resolvable:$true] %s44
      %50 = dma.hbm_to_vmem [thread:$0]  %s43, 4096, %s45, [#allocation6], 128, 128, 8
    $region13: #{tpu_custom_call.1} parent=1 // pred_fallthru
      _
    // Predicated region
    $region14: #{tpu_custom_call.1} parent=1 // pred_check
      _
    $region15: #{tpu_custom_call.1} parent=1 // pred_check_branch
      %52 = sbr.rel (0) target = $region17
    $region16: #{tpu_custom_call.1} parent=1 // pred_region
      _
    $region17: #{tpu_custom_call.1} parent=1 // pred_fallthru
      _
    // Predicated region
    $region18: #{tpu_custom_call.1} parent=1 // pred_check
      _
    $region19: #{tpu_custom_call.1} parent=1 // pred_check_branch
      %54 = sbr.rel (0) target = $region21
    $region20: #{tpu_custom_call.1} parent=1 // pred_region
      %56 = dma.done [#allocation3], 512
    $region21: #{tpu_custom_call.1} parent=1 // pred_fallthru
      _
    // Predicated region
    $region22: #{tpu_custom_call.1} parent=1 // pred_check
      _
    $region23: #{tpu_custom_call.1} parent=1 // pred_check_branch
      %58 = sbr.rel (0) target = $region25
    $region24: #{tpu_custom_call.1} parent=1 // pred_region
      %60 = dma.done [#allocation6], 512
    $region25: #{tpu_custom_call.1} parent=1 // pred_fallthru
      _
    // Predicated region
    $region26: #{tpu_custom_call.1} parent=1 // pred_check
      _
    $region27: #{tpu_custom_call.1} parent=1 // pred_check_branch
      %62 = sbr.rel (0) target = $region29
    $region28: #{tpu_custom_call.1} parent=1 // pred_region
      %64 = dma.done [#allocation6], 4096
    $region29: #{tpu_custom_call.1} parent=1 // pred_fallthru
      _
    %v65 = vld [vmem:[%s3] sm:$0x1]
    %v66 = vld [vmem:[#allocation5] sm:$0xff]
    %v67 = vld [vmem:[#allocation5 + $0x8] sm:$0xff]
    %v68 = vld [vmem:[#allocation2] sm:$0xff]
    %v69 = vld [vmem:[#allocation2 + $0x8] sm:$0xff]
    %vm70 = vcmask 130048
    %v72 = vsel %vm70, %v66, 0
    %v75 = vsel %vm70, %v67, 0
    %77 = vmatpush.msra.mxu0 0.0
    %78 = vmatpush.msra.mxu0 0.0
    %79 = vmatpush.msra.mxu0 0.0
    %80 = vmatpush.msra.mxu0 0.0
    %81 = vmatpush.msra.mxu0 0.0
    %82 = vmatpush.msra.mxu0 0.0
    %83 = vmatpush.msra.mxu0 0.0
    %84 = vmatpush.msra.mxu0 0.0
    %85 = vmatpush.msra.mxu0 0.0
    %86 = vmatpush.msra.mxu0 0.0
    %87 = vmatpush.msra.mxu0 0.0
    %88 = vmatpush.msra.mxu0 0.0
    %89 = vmatpush.msra.mxu0 0.0
    %90 = vmatpush.msra.mxu0 0.0
    %91 = vmatpush.msra.mxu0 %v69
    %92 = vmatpush.msra.mxu0 %v68
    %93 = vmatmul.f32.gmra.mxu0 %v72
    %v94 = vpop.f32.mrf.mxu0
    %v95 = vadd.f32 0.0, %v94
    %96 = vmatmul.f32.gmra.mxu0 %v75
    %v97 = vpop.f32.mrf.mxu0
    %v98 = vadd.f32 0.0, %v97
    %99 = vdwg.mxu0
    %v100 = vld [vmem:[#allocation7] sm:$0xff]
    %v101 = vld [vmem:[#allocation7 + $0x8] sm:$0xff]
    %v102 = vld [vmem:[#allocation7 + $0x10] sm:$0xff]
    %v103 = vld [vmem:[#allocation7 + $0x18] sm:$0xff]
    %v104 = vld [vmem:[#allocation7 + $0x20] sm:$0xff]
    %v105 = vld [vmem:[#allocation7 + $0x28] sm:$0xff]
    %v106 = vld [vmem:[#allocation7 + $0x30] sm:$0xff]
    %v107 = vld [vmem:[#allocation7 + $0x38] sm:$0xff]
    %v108 = vld [vmem:[#allocation7 + $0x40] sm:$0xff]
    %v109 = vld [vmem:[#allocation7 + $0x48] sm:$0xff]
    %v110 = vld [vmem:[#allocation7 + $0x50] sm:$0xff]
    %v111 = vld [vmem:[#allocation7 + $0x58] sm:$0xff]
    %v112 = vld [vmem:[#allocation7 + $0x60] sm:$0xff]
    %v113 = vld [vmem:[#allocation7 + $0x68] sm:$0xff]
    %v114 = vld [vmem:[#allocation7 + $0x70] sm:$0xff]
    %v115 = vld [vmem:[#allocation7 + $0x78] sm:$0xff]
    %116 = vmatpush.msra.mxu0 0.0
    %117 = vmatpush.msra.mxu0 0.0
    %118 = vmatpush.msra.mxu0 0.0
    %119 = vmatpush.msra.mxu0 0.0
    %120 = vmatpush.msra.mxu0 0.0
    %121 = vmatpush.msra.mxu0 0.0
    %122 = vmatpush.msra.mxu0 0.0
    %123 = vmatpush.msra.mxu0 0.0
    %124 = vmatpush.msra.mxu0 0.0
    %125 = vmatpush.msra.mxu0 0.0
    %126 = vmatpush.msra.mxu0 0.0
    %127 = vmatpush.msra.mxu0 0.0
    %128 = vmatpush.msra.mxu0 0.0
    %129 = vmatpush.msra.mxu0 0.0
    %130 = vmatpush.msra.mxu0 %v98
    %131 = vmatpush.msra.mxu0 %v95
    %132 = vmatmul.f32.gmra.mxu0 %v72
    %v133 = vpop.f32.mrf.mxu0
    %v134 = vadd.f32 0.0, %v133
    %135 = vmatmul.f32.gmra.mxu0 %v75
    %v136 = vpop.f32.mrf.mxu0
    %v137 = vadd.f32 0.0, %v136
    %138 = vdwg.mxu0
    %s139 = scalar_lea.vmem [#allocation7], 128
    %v140 = vld [vmem:[%s139] sm:$0xff]
    %v141 = vld [vmem:[%s139 + $0x8] sm:$0xff]
    %v142 = vld [vmem:[%s139 + $0x10] sm:$0xff]
    %v143 = vld [vmem:[%s139 + $0x18] sm:$0xff]
    %v144 = vld [vmem:[%s139 + $0x20] sm:$0xff]
    %v145 = vld [vmem:[%s139 + $0x28] sm:$0xff]
    %v146 = vld [vmem:[%s139 + $0x30] sm:$0xff]
    %v147 = vld [vmem:[%s139 + $0x38] sm:$0xff]
    %v148 = vld [vmem:[%s139 + $0x40] sm:$0xff]
    %v149 = vld [vmem:[%s139 + $0x48] sm:$0xff]
    %v150 = vld [vmem:[%s139 + $0x50] sm:$0xff]
    %v151 = vld [vmem:[%s139 + $0x58] sm:$0xff]
    %v152 = vld [vmem:[%s139 + $0x60] sm:$0xff]
    %v153 = vld [vmem:[%s139 + $0x68] sm:$0xff]
    %v154 = vld [vmem:[%s139 + $0x70] sm:$0xff]
    %v155 = vld [vmem:[%s139 + $0x78] sm:$0xff]
    %156 = vmatpush.msra.mxu0 %v155
    %157 = vmatpush.msra.mxu0 %v154
    %158 = vmatpush.msra.mxu0 %v153
    %159 = vmatpush.msra.mxu0 %v152
    %160 = vmatpush.msra.mxu0 %v151
    %161 = vmatpush.msra.mxu0 %v150
    %162 = vmatpush.msra.mxu0 %v149
    %163 = vmatpush.msra.mxu0 %v148
    %164 = vmatpush.msra.mxu0 %v147
    %165 = vmatpush.msra.mxu0 %v146
    %166 = vmatpush.msra.mxu0 %v145
    %167 = vmatpush.msra.mxu0 %v144
    %168 = vmatpush.msra.mxu0 %v143
    %169 = vmatpush.msra.mxu0 %v142
    %170 = vmatpush.msra.mxu0 %v141
    %171 = vmatpush.msra.mxu0 %v140
    %172 = vmatmul.f32.gmra.mxu0 %v134
    %v173 = vpop.f32.mrf.mxu0
    %v174 = vadd.f32 0.0, %v173
    %175 = vmatmul.f32.gmra.mxu0 %v137
    %v176 = vpop.f32.mrf.mxu0
    %v177 = vadd.f32 0.0, %v176
    %178 = vdwg.mxu0
    %179 = vmatpush.msra.mxu0 %v115
    %180 = vmatpush.msra.mxu0 %v114
    %181 = vmatpush.msra.mxu0 %v113
    %182 = vmatpush.msra.mxu0 %v112
    %183 = vmatpush.msra.mxu0 %v111
    %184 = vmatpush.msra.mxu0 %v110
    %185 = vmatpush.msra.mxu0 %v109
    %186 = vmatpush.msra.mxu0 %v108
    %187 = vmatpush.msra.mxu0 %v107
    %188 = vmatpush.msra.mxu0 %v106
    %189 = vmatpush.msra.mxu0 %v105
    %190 = vmatpush.msra.mxu0 %v104
    %191 = vmatpush.msra.mxu0 %v103
    %192 = vmatpush.msra.mxu0 %v102
    %193 = vmatpush.msra.mxu0 %v101
    %194 = vmatpush.msra.mxu0 %v100
    %195 = vmatmul.f32.gmra.mxu0 %v95
    %v196 = vpop.f32.mrf.mxu0
    %v197 = vadd.f32 %v174, %v196
    %198 = vmatmul.f32.gmra.mxu0 %v98
    %v199 = vpop.f32.mrf.mxu0
    %v200 = vadd.f32 %v177, %v199
    %201 = vdwg.mxu0
    %v203 = vperm.slane %v65, 0
    %v205 = vadd.f32 %v197, %v203
    %v206 = vadd.f32 %v200, %v203
    %vm207 = vcmp.gt.f32.partialorder %v205, 0.0
    %vm208 = vcmp.gt.f32.partialorder %v206, 0.0
    %v209 = vmul.f32 %v205, 0.01
    %v210 = vmul.f32 %v206, 0.01
    %v211 = vsel %vm207, %v205, %v209
    %v212 = vsel %vm208, %v206, %v210
    %213 = vst [vmem:[#allocation8] sm:$0xff] %v211
    %214 = vst [vmem:[#allocation8 + $0x8] sm:$0xff] %v212
    %s215 = scalar_lea.vmem [#allocation5], 16
    %v216 = vld [vmem:[%s215] sm:$0xff]
    %v217 = vld [vmem:[%s215 + $0x8] sm:$0xff]
    %s218 = scalar_lea.vmem [#allocation2], 16
    %v219 = vld [vmem:[%s218] sm:$0xff]
    %v220 = vld [vmem:[%s218 + $0x8] sm:$0xff]
    %v222 = vsel %vm70, %v216, 0
    %v225 = vsel %vm70, %v217, 0
    %227 = vmatpush.msra.mxu0 0.0
    %228 = vmatpush.msra.mxu0 0.0
    %229 = vmatpush.msra.mxu0 0.0
    %230 = vmatpush.msra.mxu0 0.0
    %231 = vmatpush.msra.mxu0 0.0
    %232 = vmatpush.msra.mxu0 0.0
    %233 = vmatpush.msra.mxu0 0.0
    %234 = vmatpush.msra.mxu0 0.0
    %235 = vmatpush.msra.mxu0 0.0
    %236 = vmatpush.msra.mxu0 0.0
    %237 = vmatpush.msra.mxu0 0.0
    %238 = vmatpush.msra.mxu0 0.0
    %239 = vmatpush.msra.mxu0 0.0
    %240 = vmatpush.msra.mxu0 0.0
    %241 = vmatpush.msra.mxu0 %v220
    %242 = vmatpush.msra.mxu0 %v219
    %243 = vmatmul.f32.gmra.mxu0 %v222
    %v244 = vpop.f32.mrf.mxu0
    %v245 = vadd.f32 0.0, %v244
    %246 = vmatmul.f32.gmra.mxu0 %v225
    %v247 = vpop.f32.mrf.mxu0
    %v248 = vadd.f32 0.0, %v247
    %249 = vdwg.mxu0
    %v250 = vld [vmem:[#allocation7] sm:$0xff]
    %v251 = vld [vmem:[#allocation7 + $0x8] sm:$0xff]
    %v252 = vld [vmem:[#allocation7 + $0x10] sm:$0xff]
    %v253 = vld [vmem:[#allocation7 + $0x18] sm:$0xff]
    %v254 = vld [vmem:[#allocation7 + $0x20] sm:$0xff]
    %v255 = vld [vmem:[#allocation7 + $0x28] sm:$0xff]
    %v256 = vld [vmem:[#allocation7 + $0x30] sm:$0xff]
    %v257 = vld [vmem:[#allocation7 + $0x38] sm:$0xff]
    %v258 = vld [vmem:[#allocation7 + $0x40] sm:$0xff]
    %v259 = vld [vmem:[#allocation7 + $0x48] sm:$0xff]
    %v260 = vld [vmem:[#allocation7 + $0x50] sm:$0xff]
    %v261 = vld [vmem:[#allocation7 + $0x58] sm:$0xff]
    %v262 = vld [vmem:[#allocation7 + $0x60] sm:$0xff]
    %v263 = vld [vmem:[#allocation7 + $0x68] sm:$0xff]
    %v264 = vld [vmem:[#allocation7 + $0x70] sm:$0xff]
    %v265 = vld [vmem:[#allocation7 + $0x78] sm:$0xff]
    %266 = vmatpush.msra.mxu0 0.0
    %267 = vmatpush.msra.mxu0 0.0
    %268 = vmatpush.msra.mxu0 0.0
    %269 = vmatpush.msra.mxu0 0.0
    %270 = vmatpush.msra.mxu0 0.0
    %271 = vmatpush.msra.mxu0 0.0
    %272 = vmatpush.msra.mxu0 0.0
    %273 = vmatpush.msra.mxu0 0.0
    %274 = vmatpush.msra.mxu0 0.0
    %275 = vmatpush.msra.mxu0 0.0
    %276 = vmatpush.msra.mxu0 0.0
    %277 = vmatpush.msra.mxu0 0.0
    %278 = vmatpush.msra.mxu0 0.0
    %279 = vmatpush.msra.mxu0 0.0
    %280 = vmatpush.msra.mxu0 %v248
    %281 = vmatpush.msra.mxu0 %v245
    %282 = vmatmul.f32.gmra.mxu0 %v222
    %v283 = vpop.f32.mrf.mxu0
    %v284 = vadd.f32 0.0, %v283
    %285 = vmatmul.f32.gmra.mxu0 %v225
    %v286 = vpop.f32.mrf.mxu0
    %v287 = vadd.f32 0.0, %v286
    %288 = vdwg.mxu0
    %v289 = vld [vmem:[%s139] sm:$0xff]
    %v290 = vld [vmem:[%s139 + $0x8] sm:$0xff]
    %v291 = vld [vmem:[%s139 + $0x10] sm:$0xff]
    %v292 = vld [vmem:[%s139 + $0x18] sm:$0xff]
    %v293 = vld [vmem:[%s139 + $0x20] sm:$0xff]
    %v294 = vld [vmem:[%s139 + $0x28] sm:$0xff]
    %v295 = vld [vmem:[%s139 + $0x30] sm:$0xff]
    %v296 = vld [vmem:[%s139 + $0x38] sm:$0xff]
    %v297 = vld [vmem:[%s139 + $0x40] sm:$0xff]
    %v298 = vld [vmem:[%s139 + $0x48] sm:$0xff]
    %v299 = vld [vmem:[%s139 + $0x50] sm:$0xff]
    %v300 = vld [vmem:[%s139 + $0x58] sm:$0xff]
    %v301 = vld [vmem:[%s139 + $0x60] sm:$0xff]
    %v302 = vld [vmem:[%s139 + $0x68] sm:$0xff]
    %v303 = vld [vmem:[%s139 + $0x70] sm:$0xff]
    %v304 = vld [vmem:[%s139 + $0x78] sm:$0xff]
    %305 = vmatpush.msra.mxu0 %v304
    %306 = vmatpush.msra.mxu0 %v303
    %307 = vmatpush.msra.mxu0 %v302
    %308 = vmatpush.msra.mxu0 %v301
    %309 = vmatpush.msra.mxu0 %v300
    %310 = vmatpush.msra.mxu0 %v299
    %311 = vmatpush.msra.mxu0 %v298
    %312 = vmatpush.msra.mxu0 %v297
    %313 = vmatpush.msra.mxu0 %v296
    %314 = vmatpush.msra.mxu0 %v295
    %315 = vmatpush.msra.mxu0 %v294
    %316 = vmatpush.msra.mxu0 %v293
    %317 = vmatpush.msra.mxu0 %v292
    %318 = vmatpush.msra.mxu0 %v291
    %319 = vmatpush.msra.mxu0 %v290
    %320 = vmatpush.msra.mxu0 %v289
    %321 = vmatmul.f32.gmra.mxu0 %v284
    %v322 = vpop.f32.mrf.mxu0
    %v323 = vadd.f32 0.0, %v322
    %324 = vmatmul.f32.gmra.mxu0 %v287
    %v325 = vpop.f32.mrf.mxu0
    %v326 = vadd.f32 0.0, %v325
    %327 = vdwg.mxu0
    %328 = vmatpush.msra.mxu0 %v265
    %329 = vmatpush.msra.mxu0 %v264
    %330 = vmatpush.msra.mxu0 %v263
    %331 = vmatpush.msra.mxu0 %v262
    %332 = vmatpush.msra.mxu0 %v261
    %333 = vmatpush.msra.mxu0 %v260
    %334 = vmatpush.msra.mxu0 %v259
    %335 = vmatpush.msra.mxu0 %v258
    %336 = vmatpush.msra.mxu0 %v257
    %337 = vmatpush.msra.mxu0 %v256
    %338 = vmatpush.msra.mxu0 %v255
    %339 = vmatpush.msra.mxu0 %v254
    %340 = vmatpush.msra.mxu0 %v253
    %341 = vmatpush.msra.mxu0 %v252
    %342 = vmatpush.msra.mxu0 %v251
    %343 = vmatpush.msra.mxu0 %v250
    %344 = vmatmul.f32.gmra.mxu0 %v245
    %v345 = vpop.f32.mrf.mxu0
    %v346 = vadd.f32 %v323, %v345
    %347 = vmatmul.f32.gmra.mxu0 %v248
    %v348 = vpop.f32.mrf.mxu0
    %v349 = vadd.f32 %v326, %v348
    %350 = vdwg.mxu0
    %v351 = vadd.f32 %v346, %v203
    %v352 = vadd.f32 %v349, %v203
    %vm353 = vcmp.gt.f32.partialorder %v351, 0.0
    %vm354 = vcmp.gt.f32.partialorder %v352, 0.0
    %v355 = vmul.f32 %v351, 0.01
    %v356 = vmul.f32 %v352, 0.01
    %v357 = vsel %vm353, %v351, %v355
    %v358 = vsel %vm354, %v352, %v356
    %s359 = scalar_lea.vmem [#allocation8], 16
    %360 = vst [vmem:[%s359] sm:$0xff] %v357
    %361 = vst [vmem:[%s359 + $0x8] sm:$0xff] %v358
    // Predicated region
    $region30: #{tpu_custom_call.1} parent=1 // pred_check
      _
    $region31: #{tpu_custom_call.1} parent=1 // pred_check_branch
      %363 = sbr.rel (0) target = $region33
    $region32: #{tpu_custom_call.1} parent=1 // pred_region
      %365 = vsyncadd [#allocation4], 0
      %s366 = sshll.u32 [#allocation8], 4
      %s367 = int_to_ptr.vmem [resolvable:$true] %s366
      %s368 = sshll.u32 %s4, 4
      %s369 = int_to_ptr.hbm [resolvable:$true] %s368
      %374 = dma.vmem_to_hbm [thread:$0]  %s367, 512, %s369, [#allocation4], 128, 128, 8
    $region33: #{tpu_custom_call.1} parent=1 // pred_fallthru
      _
    // Predicated region
    $region34: #{tpu_custom_call.1} parent=1 // pred_check
      _
    $region35: #{tpu_custom_call.1} parent=1 // pred_check_branch
      %376 = sbr.rel (0) target = $region37
    $region36: #{tpu_custom_call.1} parent=1 // pred_region
      %378 = dma.done [#allocation4], 512
    $region37: #{tpu_custom_call.1} parent=1 // pred_fallthru
      _
    %379 = vsyncpa [#allocation3], 1
    %380 = vsyncpa [#allocation6], 1
    %381 = vsyncpa [#allocation4], 1

</llo_original>
